<compile_context>
chip_gen: v7x
topology: tpu7x:2x2x1
jax: 0.10.0
libtpu: 0.0.40
codegen_flags: <defaults>
</compile_context>

<pallas_src>
import functools

import jax
import jax.numpy as jnp
from jax.experimental import pallas as pl
from jax.experimental.pallas import tpu as pltpu

_MAX_COLS = 2048                    # lane-dense slab width cap (multiple of 128)
_MAX_BLOCK_BYTES = 4 * 1024 * 1024  # 4 MiB / block -> <=16 MiB double-buffered in+out
_VMEM_LIMIT = 32 * 1024 * 1024      # covers the footprint on every TPU generation


def _round_up(n: int, m: int) -> int:
    return ((n + m - 1) // m) * m


def _sublane(dtype) -> int:
    # The (8, 128) block rule is the 32-bit case; 16-bit packs 16 sublanes, 8-bit 32.
    bits = jnp.dtype(dtype).itemsize * 8
    return max(8, 256 // bits)


def _largest_tile_divisor(rows: int, sublane: int, max_rows: int):
    """Largest divisor of `rows` that is a multiple of `sublane` and <= max_rows,
    mildly preferring an even grid-step count (helps the v7x two-TC split)."""
    cap = (min(max_rows, rows) // sublane) * sublane
    best = best_even = None
    d = cap
    while d >= sublane:
        if rows % d == 0:
            if best is None:
                best = d
            if best_even is None and (rows // d) % 2 == 0:
                best_even = d
            if best is not None and best_even is not None:
                break
        d -= sublane
    if best is None:
        return None
    if best_even is not None and 2 * best_even >= best:
        return best_even
    return best


def _plan(total: int, dtype):
    """Return (cols, rows, tile_rows, needs_pad) for a lane-dense 2-D tiling."""
    itemsize = jnp.dtype(dtype).itemsize
    sub = _sublane(dtype)

    # Pad-free path: cols must divide the element count exactly.
    for cols in range(_MAX_COLS, 127, -128):
        if total % cols:
            continue
        rows = total // cols
        max_rows = max(sub, _MAX_BLOCK_BYTES // (cols * itemsize))
        if rows <= max_rows:
            return cols, rows, rows, False          # one full-array block
        if rows % sub:
            continue
        tile = _largest_tile_divisor(rows, sub, max_rows)
        if tile is not None:
            return cols, rows, tile, False

    # Ragged fallback (x.size not a multiple of 128, or awkward factorization).
    cols = 1024
    rows = pl.cdiv(total, cols)
    max_rows = max(sub, _MAX_BLOCK_BYTES // (cols * itemsize))
    if rows <= max_rows:
        return cols, rows, rows, True               # single (possibly short) block
    tile = (max_rows // sub) * sub
    rows = _round_up(rows, tile)
    return cols, rows, tile, True


def _row_axis_semantics(num_steps: int):
    """CORE_PARALLEL only on v7x (2 TCs/chip) with an even step count; plain
    'parallel' elsewhere (single-TC chips)."""
    kind = ""
    try:
        kind = jax.devices()[0].device_kind.lower()
    except Exception:
        pass
    if ("v7" in kind or "tpu7" in kind) and num_steps >= 2 and num_steps % 2 == 0:
        return (pltpu.CORE_PARALLEL,)
    return ("parallel",)


def _fixed_sigmoid_kernel(x_ref, o_ref, *, half_w):
    # sigmoid(w*x) = 0.5 + 0.5 * tanh(0.5*w*x): exact, one EUP op per element.
    x = x_ref[...]
    o_ref[...] = (0.5 + 0.5 * jnp.tanh(x * half_w)).astype(o_ref.dtype)


def fixed_sigmoid(x: jax.Array, weight=0.7) -> jax.Array:
    """Elementwise y = 1 / (1 + exp(-weight * x)); weight is frozen (default 0.7)."""
    w = float(jnp.asarray(weight).reshape(()))   # frozen scalar -> compile-time constant
    orig_shape = x.shape
    total = int(x.size)

    cols, rows, tile_rows, needs_pad = _plan(total, x.dtype)

    if needs_pad:
        flat = jnp.pad(x.reshape(-1), (0, rows * cols - total))
    else:
        flat = x.reshape(-1)                      # free layout change, no extra HBM pass
    x2d = flat.reshape(rows, cols)

    grid = (rows // tile_rows,)
    out2d = pl.pallas_call(
        functools.partial(_fixed_sigmoid_kernel, half_w=0.5 * w),
        out_shape=jax.ShapeDtypeStruct((rows, cols), x.dtype),
        grid=grid,
        in_specs=[pl.BlockSpec((tile_rows, cols), lambda i: (i, 0))],
        out_specs=pl.BlockSpec((tile_rows, cols), lambda i: (i, 0)),
        compiler_params=pltpu.CompilerParams(
            dimension_semantics=_row_axis_semantics(grid[0]),
            vmem_limit_bytes=_VMEM_LIMIT,
        ),
    )(x2d)

    out = out2d.reshape(-1)
    if needs_pad:
        out = out[:total]
    return out.reshape(orig_shape)


if __name__ == "__main__":
    key = jax.random.PRNGKey(0)
    weight = 0.7  # FixedSigmoid.reset_parameters(): weight.data.fill_(0.7)

    # Small NCHW input consistent with how FixedSigmoid is used in a conv PINN.
    x = jax.random.normal(key, (2, 4, 16, 16), dtype=jnp.float32)
    out = jax.block_until_ready(fixed_sigmoid(x, weight))
    ref = 1.0 / (1.0 + jnp.exp(-weight * x))
    assert out.shape == x.shape
    assert jnp.allclose(out, ref, atol=1e-5, rtol=1e-5), "mismatch (main)"

    # Exercise the multi-step tiled path (grid > 1, 4 MiB blocks).
    x_big = jax.random.normal(jax.random.PRNGKey(1), (8, 16, 128, 128), jnp.float32)
    out_big = jax.block_until_ready(fixed_sigmoid(x_big, weight))
    ref_big = 1.0 / (1.0 + jnp.exp(-weight * x_big))
    assert jnp.allclose(out_big, ref_big, atol=1e-5, rtol=1e-5), "mismatch (tiled)"

    # Exercise the ragged (pad-fallback) path.
    x_rag = jax.random.normal(jax.random.PRNGKey(2), (3, 5, 7, 11), jnp.float32)
    out_rag = jax.block_until_ready(fixed_sigmoid(x_rag, weight))
    ref_rag = 1.0 / (1.0 + jnp.exp(-weight * x_rag))
    assert jnp.allclose(out_rag, ref_rag, atol=1e-5, rtol=1e-5), "mismatch (ragged)"

    print("KERNEL_OK")
</pallas_src>

<mosaic_0001>
module attributes {stable_mosaic.version = 11 : i64} {
  func.func @_fixed_sigmoid_kernel(%arg0: i32, %arg1: memref<1x2048xf32, #tpu.memory_space<vmem>>, %arg2: memref<1x2048xf32, #tpu.memory_space<vmem>>) attributes {dimension_semantics = [#tpu.dimension_semantics<parallel>], iteration_bounds = array<i64: 1>, scalar_prefetch = 0 : i64, scratch_operands = 0 : i64, tpu.core_type = #tpu.core_type<tc>, window_params = [{transform_indices = @transform_0, window_bounds = array<i64: 1, 2048>}, {transform_indices = @transform_1, window_bounds = array<i64: 1, 2048>}]} {
    %c0 = arith.constant 0 : index
    %c0_0 = arith.constant 0 : index
    %0 = vector.load %arg1[%c0, %c0_0] : memref<1x2048xf32, #tpu.memory_space<vmem>>, vector<1x2048xf32>
    %cst = arith.constant 3.500000e-01 : f32
    %1 = vector.broadcast %cst : f32 to vector<1x2048xf32>
    %2 = arith.mulf %0, %1 : vector<1x2048xf32>
    %3 = math.tanh %2 : vector<1x2048xf32>
    %cst_1 = arith.constant 5.000000e-01 : f32
    %4 = vector.broadcast %cst_1 : f32 to vector<1x2048xf32>
    %5 = arith.mulf %4, %3 : vector<1x2048xf32>
    %cst_2 = arith.constant 5.000000e-01 : f32
    %6 = vector.broadcast %cst_2 : f32 to vector<1x2048xf32>
    %7 = arith.addf %6, %5 : vector<1x2048xf32>
    %c0_3 = arith.constant 0 : index
    %c0_4 = arith.constant 0 : index
    %8 = vector.load %arg2[%c0_3, %c0_4] : memref<1x2048xf32, #tpu.memory_space<vmem>>, vector<1x2048xf32>
    tpu.vector_store %arg2[%c0_3, %c0_4], %7 {strides = array<i32>} : memref<1x2048xf32, #tpu.memory_space<vmem>>, vector<1x2048xf32>,
    return
  }
  func.func @transform_0(%arg0: i32) -> (i32, i32) {
    %c0_i32 = arith.constant 0 : i32
    %c0_i32_0 = arith.constant 0 : i32
    return %arg0, %c0_i32 : i32, i32
  }
  func.func @transform_1(%arg0: i32) -> (i32, i32) {
    %c0_i32 = arith.constant 0 : i32
    %c0_i32_0 = arith.constant 0 : i32
    return %arg0, %c0_i32 : i32, i32
  }
}

</mosaic_0001>

<llo_original>
// kernel: tpu_custom_call.1
$region0: #{tpu_custom_call.1}
  #allocation0 [shape = 'u32[]', space=smem, size = 0x4, offset = 0x4, fixed_abs, tag = 'smem constant byte address 0x4 - core index']
  #allocation1 [shape = 'u32[144,128]{1,0:T(1,128)}', space=vmem, size = 0x12000, scoped, tag = 'internal scratch']
  %s0 = inlined_call_operand.hbm [shape: f32[1,2048], index: 0, kind: input, shape index: {}]
  %s1 = inlined_call_operand.hbm [shape: f32[1,2048], index: 1, kind: output, shape index: {}]
  %s2 = sld [smem:[#allocation0]]
  $region18: #{tpu_custom_call.1} parent=0
    _
  %s4 = ssub.s32 1, %s2
  %s5 = scalar_select 0, %s4, %s2
  $region1: #{tpu_custom_call.1} parent=0
    #allocation2 [shape = 'u8[8192]{0}', space=vmem, size = 0x2000, scoped, tag = 'input window, operand 0, single buffered']
    #allocation3 [shape = 's32[1]{0}', space=sflag, size = 0x4, scoped, tag = 'scoped memory for tpu_custom_call.1']
    #allocation4 [shape = 's32[1]{0}', space=sflag, size = 0x4, scoped, tag = 'scoped memory for tpu_custom_call.1']
    #allocation5 [shape = 'u8[8192]{0}', space=vmem, size = 0x2000, scoped, tag = 'output window, operand 0, single buffered']
    %6 = vsyncpa [#allocation3], 0
    %7 = vsyncpa [#allocation4], 0
    // Predicated region
    $region2: #{tpu_custom_call.1} parent=1 // pred_check
      _
    $region3: #{tpu_custom_call.1} parent=1 // pred_check_branch
      %9 = sbr.rel (0) target = $region5
    $region4: #{tpu_custom_call.1} parent=1 // pred_region
      %s11 = ssub.s32 256, 256
      %12 = vsyncadd [#allocation3], %s11
      %s14 = sshll.u32 [#allocation2], 4
      %s15 = int_to_ptr.vmem [resolvable:$true] %s14
      %17 = dma.hbm_to_vmem [thread:$0]  %s0, 256, %s15, [#allocation3]
    $region5: #{tpu_custom_call.1} parent=1 // pred_fallthru
      _
    // Predicated region
    $region6: #{tpu_custom_call.1} parent=1 // pred_check
      _
    $region7: #{tpu_custom_call.1} parent=1 // pred_check_branch
      %19 = sbr.rel (0) target = $region9
    $region8: #{tpu_custom_call.1} parent=1 // pred_region
      %20 = dma.done [#allocation3], 256
    $region9: #{tpu_custom_call.1} parent=1 // pred_fallthru
      _
    %v21 = vld [vmem:[#allocation2] sm:$0xff]
    %v22 = vld [vmem:[#allocation2 + $0x8] sm:$0xff]
    %v23 = vmul.f32 %v21, 0.35
    %v24 = vmul.f32 %v22, 0.35
    %v25 = vtanh.pop %v23
    %v26 = vtanh.pop %v24
    %v27 = vmul.f32 %v25, 0.5
    %v28 = vmul.f32 %v26, 0.5
    %v29 = vadd.f32 %v27, 0.5
    %v30 = vadd.f32 %v28, 0.5
    %31 = vst [vmem:[#allocation5] sm:$0xff] %v29
    %32 = vst [vmem:[#allocation5 + $0x8] sm:$0xff] %v30
    // Predicated region
    $region10: #{tpu_custom_call.1} parent=1 // pred_check
      _
    $region11: #{tpu_custom_call.1} parent=1 // pred_check_branch
      %34 = sbr.rel (0) target = $region13
    $region12: #{tpu_custom_call.1} parent=1 // pred_region
      %s36 = ssub.s32 256, 256
      %37 = vsyncadd [#allocation4], %s36
      %s39 = sshll.u32 [#allocation5], 4
      %s40 = int_to_ptr.vmem [resolvable:$true] %s39
      %42 = dma.vmem_to_hbm [thread:$0]  %s40, 256, %s1, [#allocation4]
    $region13: #{tpu_custom_call.1} parent=1 // pred_fallthru
      _
    // Predicated region
    $region14: #{tpu_custom_call.1} parent=1 // pred_check
      _
    $region15: #{tpu_custom_call.1} parent=1 // pred_check_branch
      %44 = sbr.rel (0) target = $region17
    $region16: #{tpu_custom_call.1} parent=1 // pred_region
      %45 = dma.done [#allocation4], 256
    $region17: #{tpu_custom_call.1} parent=1 // pred_fallthru
      _
    %46 = vsyncpa [#allocation3], 1
    %47 = vsyncpa [#allocation4], 1

</llo_original>
